<compile_context>
chip_gen: v7x
topology: tpu7x:2x2x1
jax: 0.10.0
libtpu: 0.0.40
codegen_flags: <defaults>
</compile_context>

<pallas_src>
import functools

import jax
import jax.numpy as jnp
from jax import lax
from jax.experimental import pallas as pl
from jax.experimental.pallas import tpu as pltpu


_LANE = 128                 # lane width: last dim of every block
# 2048 rows * 128 lanes * 4 B = 1 MiB of f32 per stream per grid step.
_MAX_ROWS_PER_TILE = 2048
# Above ~8 frames the unrolled hat-weight resampling turns VALU-bound;
# fall back to the dense path instead.
_FUSE_FRAME_LIMIT = 8


# ------------------------------ tiling plan -------------------------------- #

def _plan_rows(n_rows, max_rows=None):
    """Pick (rows_per_tile, n_tiles) for a signal of n_rows rows of 128."""
    cap = _MAX_ROWS_PER_TILE if max_rows is None else max_rows
    if n_rows <= cap:
        # Whole (padded) signal in one block: block dim == full array dim,
        # so no (8,128) divisibility issue and no pipeline overhead.
        return n_rows, 1
    rows = max(8, (cap // 8) * 8)          # multiple of 8 sublanes
    return rows, pl.cdiv(n_rows, rows)     # last block may be partial (masked)


def _to_rows(x, n_rows):
    """[B, N] -> [B, n_rows, 128]; pads only when N is not lane-aligned."""
    b, n = x.shape
    n_pad = n_rows * _LANE
    if n_pad != n:
        x = jnp.pad(x, ((0, 0), (0, n_pad - n)))
    return x.reshape(b, n_rows, _LANE)     # free bitcast when no pad


def _from_rows(y, n):
    b = y.shape[0]
    y = y.reshape(b, -1)
    return y if y.shape[1] == n else y[:, :n]


# ------------------------------ Pallas kernels ----------------------------- #

def _mix_dense_kernel(sa_ref, sb_ref, ma_ref, mb_ref, o_ref):
    # Pure elementwise mix; envelopes already at sample rate.
    o_ref[...] = ma_ref[...] * sa_ref[...] + mb_ref[...] * sb_ref[...]


def _mix_scalar_kernel(ma_sm, mb_sm, sa_ref, sb_ref, o_ref):
    # Per-batch scalar mix; scalars live in SMEM (scalar prefetch), so only
    # the two signals and the output touch HBM.
    b = pl.program_id(0)
    o_ref[...] = ma_sm[b] * sa_ref[...] + mb_sm[b] * sb_ref[...]


def _mix_frames_kernel(ma_sm, mb_sm, sa_ref, sb_ref, o_ref, *,
                       n_samples, n_frames, rows):
    # Fused frame->sample linear resampling + mix.
    # ma_sm / mb_sm: [B, F] frame envelopes in SMEM (scalar prefetch).
    b = pl.program_id(0)
    t = pl.program_id(1)

    # Position of every sample of this tile on the frame grid (half-pixel-
    # centre linear resampling, edge clamped).  The tile offset is folded in
    # AFTER scaling so the int->float conversion of the local index stays
    # exact (< rows*128 <= 2^18), avoiding envelope drift on long audio.
    row_i = lax.broadcasted_iota(jnp.int32, (rows, _LANE), 0)
    lane_i = lax.broadcasted_iota(jnp.int32, (rows, _LANE), 1)
    local = (row_i * _LANE + lane_i).astype(jnp.float32)
    scale = float(n_frames) / float(n_samples)
    base = (t * (rows * _LANE)).astype(jnp.float32) * scale
    pos = jnp.clip(base + (local + 0.5) * scale - 0.5,
                   0.0, float(n_frames - 1))

    env_a = jnp.zeros((rows, _LANE), jnp.float32)
    env_b = jnp.zeros((rows, _LANE), jnp.float32)
    # Static unroll over the (small, <= _FUSE_FRAME_LIMIT) control-rate frame
    # axis: hat weights max(0, 1 - |pos - f|) are exactly linear interpolation
    # with edge clamping; weights are shared between the two envelopes.
    for f in range(n_frames):
        w = jnp.maximum(0.0, 1.0 - jnp.abs(pos - float(f)))
        env_a = env_a + w * ma_sm[b, f]
        env_b = env_b + w * mb_sm[b, f]

    o_ref[...] = env_a * sa_ref[...] + env_b * sb_ref[...]


# ------------------------------ kernel drivers ----------------------------- #

def _run_dense(signal_a, signal_b, mix_a_bn, mix_b_bn, max_rows=None):
    B, N = signal_a.shape
    n_rows = pl.cdiv(N, _LANE)
    rows, n_tiles = _plan_rows(n_rows, max_rows)
    ops = [_to_rows(x, n_rows) for x in (signal_a, signal_b, mix_a_bn, mix_b_bn)]
    spec = pl.BlockSpec((None, rows, _LANE), lambda b, t: (b, t, 0))
    out = pl.pallas_call(
        _mix_dense_kernel,
        out_shape=jax.ShapeDtypeStruct((B, n_rows, _LANE), jnp.float32),
        grid_spec=pl.GridSpec(
            grid=(B, n_tiles),
            in_specs=[spec, spec, spec, spec],
            out_specs=spec,
        ),
        compiler_params=pltpu.CompilerParams(
            dimension_semantics=("parallel", "parallel")),
    )(*ops)
    return _from_rows(out, N)


def _run_scalar(signal_a, signal_b, mix_a_b, mix_b_b, max_rows=None):
    B, N = signal_a.shape
    n_rows = pl.cdiv(N, _LANE)
    rows, n_tiles = _plan_rows(n_rows, max_rows)
    sa3 = _to_rows(signal_a, n_rows)
    sb3 = _to_rows(signal_b, n_rows)
    spec = pl.BlockSpec((None, rows, _LANE), lambda b, t, *_: (b, t, 0))
    out = pl.pallas_call(
        _mix_scalar_kernel,
        out_shape=jax.ShapeDtypeStruct((B, n_rows, _LANE), jnp.float32),
        grid_spec=pltpu.PrefetchScalarGridSpec(
            num_scalar_prefetch=2,
            grid=(B, n_tiles),
            in_specs=[spec, spec],
            out_specs=spec,
        ),
        compiler_params=pltpu.CompilerParams(
            dimension_semantics=("parallel", "parallel")),
    )(mix_a_b, mix_b_b, sa3, sb3)
    return _from_rows(out, N)


def _run_frames(signal_a, signal_b, mix_a_bf, mix_b_bf, max_rows=None):
    B, N = signal_a.shape
    n_frames = int(mix_a_bf.shape[1])
    n_rows = pl.cdiv(N, _LANE)
    rows, n_tiles = _plan_rows(n_rows, max_rows)
    sa3 = _to_rows(signal_a, n_rows)
    sb3 = _to_rows(signal_b, n_rows)
    kern = functools.partial(_mix_frames_kernel, n_samples=N,
                             n_frames=n_frames, rows=rows)
    spec = pl.BlockSpec((None, rows, _LANE), lambda b, t, *_: (b, t, 0))
    out = pl.pallas_call(
        kern,
        out_shape=jax.ShapeDtypeStruct((B, n_rows, _LANE), jnp.float32),
        grid_spec=pltpu.PrefetchScalarGridSpec(
            num_scalar_prefetch=2,
            grid=(B, n_tiles),
            in_specs=[spec, spec],
            out_specs=spec,
        ),
        compiler_params=pltpu.CompilerParams(
            dimension_semantics=("parallel", "parallel")),
    )(mix_a_bf, mix_b_bf, sa3, sb3)
    return _from_rows(out, N)


# ------------------------------- JAX glue ---------------------------------- #

def _interp_frames(frames_bf, n_samples):
    """Linear (half-pixel-centre, edge-clamped) resample [B, F] -> [B, N]."""
    B, F = frames_bf.shape
    if F == n_samples:
        return frames_bf
    j = jnp.arange(n_samples, dtype=jnp.float32)
    pos = jnp.clip((j + 0.5) * (float(F) / float(n_samples)) - 0.5,
                   0.0, float(F - 1))
    lo = jnp.floor(pos).astype(jnp.int32)
    hi = jnp.minimum(lo + 1, F - 1)
    frac = pos - lo.astype(jnp.float32)
    return (frames_bf[:, lo] * (1.0 - frac)[None, :]
            + frames_bf[:, hi] * frac[None, :])


def mix_forward(params, n_samples, *, max_rows_per_tile=None):
    """Pallas implementation of Mix.forward.

    params: dict with
      'signal_a', 'signal_b' : [B, n_samples] float32
      'mix_a', 'mix_b'       : [B, F, 1] (frame-wise) or [B]-shaped scalars
    """
    signal_a = jnp.asarray(params["signal_a"], jnp.float32)
    signal_b = jnp.asarray(params["signal_b"], jnp.float32)
    mix_a = jnp.asarray(params["mix_a"], jnp.float32)
    mix_b = jnp.asarray(params["mix_b"], jnp.float32)

    B, N = signal_a.shape
    assert N == n_samples

    if mix_a.ndim > 1:
        mix_a_bf = mix_a[:, :, 0] if mix_a.ndim == 3 else mix_a
        mix_b_bf = mix_b[:, :, 0] if mix_b.ndim == 3 else mix_b
        Fa, Fb = mix_a_bf.shape[1], mix_b_bf.shape[1]
        if Fa == Fb and Fa != n_samples and Fa <= _FUSE_FRAME_LIMIT:
            # Hot path: fuse envelope resampling into the kernel; envelopes
            # never hit HBM at sample rate (3 streams instead of ~7).
            return _run_frames(signal_a, signal_b, mix_a_bf, mix_b_bf,
                               max_rows_per_tile)
        # Fallback (already sample-rate, mismatched / large frame counts):
        # resample outside and run the dense elementwise kernel.
        mix_a_bn = _interp_frames(mix_a_bf, n_samples)
        mix_b_bn = _interp_frames(mix_b_bf, n_samples)
        return _run_dense(signal_a, signal_b, mix_a_bn, mix_b_bn,
                          max_rows_per_tile)

    # Scalar / per-batch mix: keep as [B] scalars in SMEM (no [B, N] broadcast).
    mix_a_b = jnp.broadcast_to(jnp.reshape(mix_a, (-1,)), (B,)).astype(jnp.float32)
    mix_b_b = jnp.broadcast_to(jnp.reshape(mix_b, (-1,)), (B,)).astype(jnp.float32)
    return _run_scalar(signal_a, signal_b, mix_a_b, mix_b_b, max_rows_per_tile)


# Processor.scale_params for Mix ('raw' passthrough; 'sigmoid' ->
# p * (hi - lo) + lo; for the (0, 1) mix range this is identity).
_PARAM_RANGE = {"signal_a": (-1.0, 1.0), "signal_b": (-1.0, 1.0),
                "mix_a": (0.0, 1.0), "mix_b": (0.0, 1.0)}
_PARAM_TYPES = {"signal_a": "raw", "signal_b": "raw",
                "mix_a": "sigmoid", "mix_b": "sigmoid"}


def scale_params(params, scaled_params=()):
    out = {}
    for k, v in params.items():
        if k not in _PARAM_TYPES:
            raise ValueError(f"Specified non-existent parameter mix: {k}")
        lo, hi = _PARAM_RANGE[k]
        if _PARAM_TYPES[k] == "raw" or k in scaled_params:
            out[k] = v
        else:  # 'sigmoid'
            out[k] = v * (hi - lo) + lo
    return out


# ------------------------------- reference --------------------------------- #

def mix_forward_ref(params, n_samples):
    signal_a = jnp.asarray(params["signal_a"], jnp.float32)
    signal_b = jnp.asarray(params["signal_b"], jnp.float32)
    mix_a = jnp.asarray(params["mix_a"], jnp.float32)
    mix_b = jnp.asarray(params["mix_b"], jnp.float32)
    if mix_a.ndim > 1:
        mix_a_bf = mix_a[:, :, 0] if mix_a.ndim == 3 else mix_a
        mix_b_bf = mix_b[:, :, 0] if mix_b.ndim == 3 else mix_b
        ma = _interp_frames(mix_a_bf, n_samples)
        mb = _interp_frames(mix_b_bf, n_samples)
        return ma * signal_a + mb * signal_b
    B = signal_a.shape[0]
    ma = jnp.broadcast_to(jnp.reshape(mix_a, (-1,)), (B,))
    mb = jnp.broadcast_to(jnp.reshape(mix_b, (-1,)), (B,))
    return ma[:, None] * signal_a + mb[:, None] * signal_b


# --------------------------------- main ------------------------------------ #

if __name__ == "__main__":
    key = jax.random.PRNGKey(0)
    B = 2
    n_samples = 1024   # multiple of 128 lanes
    n_frames = 8       # coarse control-rate envelope (<= _FUSE_FRAME_LIMIT)

    k1, k2, k3, k4 = jax.random.split(key, 4)
    params = {
        "signal_a": jax.random.uniform(k1, (B, n_samples), jnp.float32, -1.0, 1.0),
        "signal_b": jax.random.uniform(k2, (B, n_samples), jnp.float32, -1.0, 1.0),
        "mix_a": jax.random.uniform(k3, (B, n_frames, 1), jnp.float32, 0.0, 1.0),
        "mix_b": jax.random.uniform(k4, (B, n_frames, 1), jnp.float32, 0.0, 1.0),
    }
    params = scale_params(params)

    # 1) frame-wise branch (fused in-kernel envelope resampling, single block)
    out = jax.block_until_ready(mix_forward(params, n_samples))
    ref = mix_forward_ref(params, n_samples)
    assert out.shape == (B, n_samples)
    assert float(jnp.max(jnp.abs(out - ref))) < 1e-5

    # 2) frame-wise branch with F == n_samples (dense elementwise kernel path)
    kd1, kd2 = jax.random.split(k3, 2)
    params_dense = dict(params)
    params_dense["mix_a"] = jax.random.uniform(kd1, (B, n_samples, 1), jnp.float32, 0.0, 1.0)
    params_dense["mix_b"] = jax.random.uniform(kd2, (B, n_samples, 1), jnp.float32, 0.0, 1.0)
    out_d = jax.block_until_ready(mix_forward(params_dense, n_samples))
    ref_d = mix_forward_ref(params_dense, n_samples)
    assert float(jnp.max(jnp.abs(out_d - ref_d))) < 1e-5

    # 3) scalar branch (per-batch scalars via SMEM scalar prefetch)
    params_scalar = dict(params)
    params_scalar["mix_a"] = jnp.array([0.3, 0.7], jnp.float32)
    params_scalar["mix_b"] = jnp.array([0.9, 0.1], jnp.float32)
    out_s = jax.block_until_ready(mix_forward(params_scalar, n_samples))
    ref_s = mix_forward_ref(params_scalar, n_samples)
    assert float(jnp.max(jnp.abs(out_s - ref_s))) < 1e-5

    # 4) sample count not a multiple of 128 (exercises wrapper-side padding)
    n_odd = 1000
    params_odd = {
        "signal_a": params["signal_a"][:, :n_odd],
        "signal_b": params["signal_b"][:, :n_odd],
        "mix_a": params["mix_a"],
        "mix_b": params["mix_b"],
    }
    out_o = jax.block_until_ready(mix_forward(params_odd, n_odd))
    ref_o = mix_forward_ref(params_odd, n_odd)
    assert out_o.shape == (B, n_odd)
    assert float(jnp.max(jnp.abs(out_o - ref_o))) < 1e-5

    # 5) multi-tile grid with a partial last block (small tile cap so the
    #    pipelined / ragged-block path is exercised at a small shape)
    n_multi = 2500
    km1, km2 = jax.random.split(k4, 2)
    params_multi = {
        "signal_a": jax.random.uniform(km1, (B, n_multi), jnp.float32, -1.0, 1.0),
        "signal_b": jax.random.uniform(km2, (B, n_multi), jnp.float32, -1.0, 1.0),
        "mix_a": params["mix_a"],
        "mix_b": params["mix_b"],
    }
    out_m = jax.block_until_ready(
        mix_forward(params_multi, n_multi, max_rows_per_tile=8))
    ref_m = mix_forward_ref(params_multi, n_multi)
    assert out_m.shape == (B, n_multi)
    assert float(jnp.max(jnp.abs(out_m - ref_m))) < 1e-5

    out_ms = jax.block_until_ready(
        mix_forward({**params_multi,
                     "mix_a": jnp.array([0.3, 0.7], jnp.float32),
                     "mix_b": jnp.array([0.9, 0.1], jnp.float32)},
                    n_multi, max_rows_per_tile=8))
    ref_ms = mix_forward_ref({**params_multi,
                              "mix_a": jnp.array([0.3, 0.7], jnp.float32),
                              "mix_b": jnp.array([0.9, 0.1], jnp.float32)},
                             n_multi)
    assert float(jnp.max(jnp.abs(out_ms - ref_ms))) < 1e-5

    print("KERNEL_OK")
</pallas_src>

<mosaic_0001>
module attributes {stable_mosaic.version = 11 : i64} {
  func.func @_mix_frames_kernel(%arg0: i32, %arg1: i32, %arg2: memref<2x8xf32, #tpu.memory_space<smem>>, %arg3: memref<2x8xf32, #tpu.memory_space<smem>>, %arg4: memref<1x8x128xf32, #tpu.memory_space<vmem>>, %arg5: memref<1x8x128xf32, #tpu.memory_space<vmem>>, %arg6: memref<1x8x128xf32, #tpu.memory_space<vmem>>) attributes {dimension_semantics = [#tpu.dimension_semantics<parallel>, #tpu.dimension_semantics<parallel>], iteration_bounds = array<i64: 2, 1>, scalar_prefetch = 2 : i64, scratch_operands = 0 : i64, tpu.core_type = #tpu.core_type<tc>, window_params = [{transform_indices = @transform_0, window_bounds = array<i64: 1, 8, 128>}, {transform_indices = @transform_1, window_bounds = array<i64: 1, 8, 128>}, {transform_indices = @transform_2, window_bounds = array<i64: 1, 8, 128>}]} {
    %0 = tpu.iota {dimensions = array<i32: 0>} : vector<8x128xi32>
    %1 = tpu.iota {dimensions = array<i32: 1>} : vector<8x128xi32>
    %c128_i32 = arith.constant 128 : i32
    %2 = vector.broadcast %c128_i32 : i32 to vector<8x128xi32>
    %3 = arith.muli %0, %2 : vector<8x128xi32>
    %4 = arith.addi %3, %1 : vector<8x128xi32>
    %5 = arith.sitofp %4 : vector<8x128xi32> to vector<8x128xf32>
    %c1024_i32 = arith.constant 1024 : i32
    %6 = arith.muli %arg1, %c1024_i32 : i32
    %7 = arith.sitofp %6 : i32 to f32
    %cst = arith.constant 7.812500e-03 : f32
    %8 = arith.mulf %7, %cst : f32
    %cst_0 = arith.constant 5.000000e-01 : f32
    %9 = vector.broadcast %cst_0 : f32 to vector<8x128xf32>
    %10 = arith.addf %5, %9 : vector<8x128xf32>
    %cst_1 = arith.constant 7.812500e-03 : f32
    %11 = vector.broadcast %cst_1 : f32 to vector<8x128xf32>
    %12 = arith.mulf %10, %11 : vector<8x128xf32>
    %13 = vector.broadcast %8 : f32 to vector<8x128xf32>
    %14 = arith.addf %13, %12 : vector<8x128xf32>
    %cst_2 = arith.constant 5.000000e-01 : f32
    %15 = vector.broadcast %cst_2 : f32 to vector<8x128xf32>
    %16 = arith.subf %14, %15 : vector<8x128xf32>
    %cst_3 = arith.constant 0.000000e+00 : f32
    %cst_4 = arith.constant 7.000000e+00 : f32
    %17 = vector.broadcast %cst_3 : f32 to vector<8x128xf32>
    %18 = arith.maximumf %17, %16 : vector<8x128xf32>
    %19 = vector.broadcast %cst_4 : f32 to vector<8x128xf32>
    %20 = arith.minimumf %19, %18 : vector<8x128xf32>
    %cst_5 = arith.constant 0.000000e+00 : f32
    %21 = vector.broadcast %cst_5 : f32 to vector<8x128xf32>
    %cst_6 = arith.constant 0.000000e+00 : f32
    %22 = vector.broadcast %cst_6 : f32 to vector<8x128xf32>
    %cst_7 = arith.constant 0.000000e+00 : f32
    %23 = vector.broadcast %cst_7 : f32 to vector<8x128xf32>
    %24 = arith.subf %20, %23 : vector<8x128xf32>
    %25 = math.absf %24 : vector<8x128xf32>
    %cst_8 = arith.constant 1.000000e+00 : f32
    %26 = vector.broadcast %cst_8 : f32 to vector<8x128xf32>
    %27 = arith.subf %26, %25 : vector<8x128xf32>
    %cst_9 = arith.constant 0.000000e+00 : f32
    %28 = vector.broadcast %cst_9 : f32 to vector<8x128xf32>
    %29 = arith.maximumf %28, %27 : vector<8x128xf32>
    %30 = arith.index_cast %arg0 : i32 to index
    %c0 = arith.constant 0 : index
    %31 = memref.load %arg2[%30, %c0] : memref<2x8xf32, #tpu.memory_space<smem>>
    %32 = vector.broadcast %31 : f32 to vector<8x128xf32>
    %33 = arith.mulf %29, %32 : vector<8x128xf32>
    %34 = arith.addf %21, %33 : vector<8x128xf32>
    %35 = arith.index_cast %arg0 : i32 to index
    %c0_10 = arith.constant 0 : index
    %36 = memref.load %arg3[%35, %c0_10] : memref<2x8xf32, #tpu.memory_space<smem>>
    %37 = vector.broadcast %36 : f32 to vector<8x128xf32>
    %38 = arith.mulf %29, %37 : vector<8x128xf32>
    %39 = arith.addf %22, %38 : vector<8x128xf32>
    %cst_11 = arith.constant 1.000000e+00 : f32
    %40 = vector.broadcast %cst_11 : f32 to vector<8x128xf32>
    %41 = arith.subf %20, %40 : vector<8x128xf32>
    %42 = math.absf %41 : vector<8x128xf32>
    %cst_12 = arith.constant 1.000000e+00 : f32
    %43 = vector.broadcast %cst_12 : f32 to vector<8x128xf32>
    %44 = arith.subf %43, %42 : vector<8x128xf32>
    %cst_13 = arith.constant 0.000000e+00 : f32
    %45 = vector.broadcast %cst_13 : f32 to vector<8x128xf32>
    %46 = arith.maximumf %45, %44 : vector<8x128xf32>
    %47 = arith.index_cast %arg0 : i32 to index
    %c1 = arith.constant 1 : index
    %48 = memref.load %arg2[%47, %c1] : memref<2x8xf32, #tpu.memory_space<smem>>
    %49 = vector.broadcast %48 : f32 to vector<8x128xf32>
    %50 = arith.mulf %46, %49 : vector<8x128xf32>
    %51 = arith.addf %34, %50 : vector<8x128xf32>
    %52 = arith.index_cast %arg0 : i32 to index
    %c1_14 = arith.constant 1 : index
    %53 = memref.load %arg3[%52, %c1_14] : memref<2x8xf32, #tpu.memory_space<smem>>
    %54 = vector.broadcast %53 : f32 to vector<8x128xf32>
    %55 = arith.mulf %46, %54 : vector<8x128xf32>
    %56 = arith.addf %39, %55 : vector<8x128xf32>
    %cst_15 = arith.constant 2.000000e+00 : f32
    %57 = vector.broadcast %cst_15 : f32 to vector<8x128xf32>
    %58 = arith.subf %20, %57 : vector<8x128xf32>
    %59 = math.absf %58 : vector<8x128xf32>
    %cst_16 = arith.constant 1.000000e+00 : f32
    %60 = vector.broadcast %cst_16 : f32 to vector<8x128xf32>
    %61 = arith.subf %60, %59 : vector<8x128xf32>
    %cst_17 = arith.constant 0.000000e+00 : f32
    %62 = vector.broadcast %cst_17 : f32 to vector<8x128xf32>
    %63 = arith.maximumf %62, %61 : vector<8x128xf32>
    %64 = arith.index_cast %arg0 : i32 to index
    %c2 = arith.constant 2 : index
    %65 = memref.load %arg2[%64, %c2] : memref<2x8xf32, #tpu.memory_space<smem>>
    %66 = vector.broadcast %65 : f32 to vector<8x128xf32>
    %67 = arith.mulf %63, %66 : vector<8x128xf32>
    %68 = arith.addf %51, %67 : vector<8x128xf32>
    %69 = arith.index_cast %arg0 : i32 to index
    %c2_18 = arith.constant 2 : index
    %70 = memref.load %arg3[%69, %c2_18] : memref<2x8xf32, #tpu.memory_space<smem>>
    %71 = vector.broadcast %70 : f32 to vector<8x128xf32>
    %72 = arith.mulf %63, %71 : vector<8x128xf32>
    %73 = arith.addf %56, %72 : vector<8x128xf32>
    %cst_19 = arith.constant 3.000000e+00 : f32
    %74 = vector.broadcast %cst_19 : f32 to vector<8x128xf32>
    %75 = arith.subf %20, %74 : vector<8x128xf32>
    %76 = math.absf %75 : vector<8x128xf32>
    %cst_20 = arith.constant 1.000000e+00 : f32
    %77 = vector.broadcast %cst_20 : f32 to vector<8x128xf32>
    %78 = arith.subf %77, %76 : vector<8x128xf32>
    %cst_21 = arith.constant 0.000000e+00 : f32
    %79 = vector.broadcast %cst_21 : f32 to vector<8x128xf32>
    %80 = arith.maximumf %79, %78 : vector<8x128xf32>
    %81 = arith.index_cast %arg0 : i32 to index
    %c3 = arith.constant 3 : index
    %82 = memref.load %arg2[%81, %c3] : memref<2x8xf32, #tpu.memory_space<smem>>
    %83 = vector.broadcast %82 : f32 to vector<8x128xf32>
    %84 = arith.mulf %80, %83 : vector<8x128xf32>
    %85 = arith.addf %68, %84 : vector<8x128xf32>
    %86 = arith.index_cast %arg0 : i32 to index
    %c3_22 = arith.constant 3 : index
    %87 = memref.load %arg3[%86, %c3_22] : memref<2x8xf32, #tpu.memory_space<smem>>
    %88 = vector.broadcast %87 : f32 to vector<8x128xf32>
    %89 = arith.mulf %80, %88 : vector<8x128xf32>
    %90 = arith.addf %73, %89 : vector<8x128xf32>
    %cst_23 = arith.constant 4.000000e+00 : f32
    %91 = vector.broadcast %cst_23 : f32 to vector<8x128xf32>
    %92 = arith.subf %20, %91 : vector<8x128xf32>
    %93 = math.absf %92 : vector<8x128xf32>
    %cst_24 = arith.constant 1.000000e+00 : f32
    %94 = vector.broadcast %cst_24 : f32 to vector<8x128xf32>
    %95 = arith.subf %94, %93 : vector<8x128xf32>
    %cst_25 = arith.constant 0.000000e+00 : f32
    %96 = vector.broadcast %cst_25 : f32 to vector<8x128xf32>
    %97 = arith.maximumf %96, %95 : vector<8x128xf32>
    %98 = arith.index_cast %arg0 : i32 to index
    %c4 = arith.constant 4 : index
    %99 = memref.load %arg2[%98, %c4] : memref<2x8xf32, #tpu.memory_space<smem>>
    %100 = vector.broadcast %99 : f32 to vector<8x128xf32>
    %101 = arith.mulf %97, %100 : vector<8x128xf32>
    %102 = arith.addf %85, %101 : vector<8x128xf32>
    %103 = arith.index_cast %arg0 : i32 to index
    %c4_26 = arith.constant 4 : index
    %104 = memref.load %arg3[%103, %c4_26] : memref<2x8xf32, #tpu.memory_space<smem>>
    %105 = vector.broadcast %104 : f32 to vector<8x128xf32>
    %106 = arith.mulf %97, %105 : vector<8x128xf32>
    %107 = arith.addf %90, %106 : vector<8x128xf32>
    %cst_27 = arith.constant 5.000000e+00 : f32
    %108 = vector.broadcast %cst_27 : f32 to vector<8x128xf32>
    %109 = arith.subf %20, %108 : vector<8x128xf32>
    %110 = math.absf %109 : vector<8x128xf32>
    %cst_28 = arith.constant 1.000000e+00 : f32
    %111 = vector.broadcast %cst_28 : f32 to vector<8x128xf32>
    %112 = arith.subf %111, %110 : vector<8x128xf32>
    %cst_29 = arith.constant 0.000000e+00 : f32
    %113 = vector.broadcast %cst_29 : f32 to vector<8x128xf32>
    %114 = arith.maximumf %113, %112 : vector<8x128xf32>
    %115 = arith.index_cast %arg0 : i32 to index
    %c5 = arith.constant 5 : index
    %116 = memref.load %arg2[%115, %c5] : memref<2x8xf32, #tpu.memory_space<smem>>
    %117 = vector.broadcast %116 : f32 to vector<8x128xf32>
    %118 = arith.mulf %114, %117 : vector<8x128xf32>
    %119 = arith.addf %102, %118 : vector<8x128xf32>
    %120 = arith.index_cast %arg0 : i32 to index
    %c5_30 = arith.constant 5 : index
    %121 = memref.load %arg3[%120, %c5_30] : memref<2x8xf32, #tpu.memory_space<smem>>
    %122 = vector.broadcast %121 : f32 to vector<8x128xf32>
    %123 = arith.mulf %114, %122 : vector<8x128xf32>
    %124 = arith.addf %107, %123 : vector<8x128xf32>
    %cst_31 = arith.constant 6.000000e+00 : f32
    %125 = vector.broadcast %cst_31 : f32 to vector<8x128xf32>
    %126 = arith.subf %20, %125 : vector<8x128xf32>
    %127 = math.absf %126 : vector<8x128xf32>
    %cst_32 = arith.constant 1.000000e+00 : f32
    %128 = vector.broadcast %cst_32 : f32 to vector<8x128xf32>
    %129 = arith.subf %128, %127 : vector<8x128xf32>
    %cst_33 = arith.constant 0.000000e+00 : f32
    %130 = vector.broadcast %cst_33 : f32 to vector<8x128xf32>
    %131 = arith.maximumf %130, %129 : vector<8x128xf32>
    %132 = arith.index_cast %arg0 : i32 to index
    %c6 = arith.constant 6 : index
    %133 = memref.load %arg2[%132, %c6] : memref<2x8xf32, #tpu.memory_space<smem>>
    %134 = vector.broadcast %133 : f32 to vector<8x128xf32>
    %135 = arith.mulf %131, %134 : vector<8x128xf32>
    %136 = arith.addf %119, %135 : vector<8x128xf32>
    %137 = arith.index_cast %arg0 : i32 to index
    %c6_34 = arith.constant 6 : index
    %138 = memref.load %arg3[%137, %c6_34] : memref<2x8xf32, #tpu.memory_space<smem>>
    %139 = vector.broadcast %138 : f32 to vector<8x128xf32>
    %140 = arith.mulf %131, %139 : vector<8x128xf32>
    %141 = arith.addf %124, %140 : vector<8x128xf32>
    %cst_35 = arith.constant 7.000000e+00 : f32
    %142 = vector.broadcast %cst_35 : f32 to vector<8x128xf32>
    %143 = arith.subf %20, %142 : vector<8x128xf32>
    %144 = math.absf %143 : vector<8x128xf32>
    %cst_36 = arith.constant 1.000000e+00 : f32
    %145 = vector.broadcast %cst_36 : f32 to vector<8x128xf32>
    %146 = arith.subf %145, %144 : vector<8x128xf32>
    %cst_37 = arith.constant 0.000000e+00 : f32
    %147 = vector.broadcast %cst_37 : f32 to vector<8x128xf32>
    %148 = arith.maximumf %147, %146 : vector<8x128xf32>
    %149 = arith.index_cast %arg0 : i32 to index
    %c7 = arith.constant 7 : index
    %150 = memref.load %arg2[%149, %c7] : memref<2x8xf32, #tpu.memory_space<smem>>
    %151 = vector.broadcast %150 : f32 to vector<8x128xf32>
    %152 = arith.mulf %148, %151 : vector<8x128xf32>
    %153 = arith.addf %136, %152 : vector<8x128xf32>
    %154 = arith.index_cast %arg0 : i32 to index
    %c7_38 = arith.constant 7 : index
    %155 = memref.load %arg3[%154, %c7_38] : memref<2x8xf32, #tpu.memory_space<smem>>
    %156 = vector.broadcast %155 : f32 to vector<8x128xf32>
    %157 = arith.mulf %148, %156 : vector<8x128xf32>
    %158 = arith.addf %141, %157 : vector<8x128xf32>
    %c0_39 = arith.constant 0 : index
    %c0_40 = arith.constant 0 : index
    %c0_41 = arith.constant 0 : index
    %159 = vector.load %arg4[%c0_39, %c0_40, %c0_41] : memref<1x8x128xf32, #tpu.memory_space<vmem>>, vector<1x8x128xf32>
    %160 = vector.shape_cast %159 : vector<1x8x128xf32> to vector<8x128xf32>
    %161 = arith.mulf %153, %160 : vector<8x128xf32>
    %c0_42 = arith.constant 0 : index
    %c0_43 = arith.constant 0 : index
    %c0_44 = arith.constant 0 : index
    %162 = vector.load %arg5[%c0_42, %c0_43, %c0_44] : memref<1x8x128xf32, #tpu.memory_space<vmem>>, vector<1x8x128xf32>
    %163 = vector.shape_cast %162 : vector<1x8x128xf32> to vector<8x128xf32>
    %164 = arith.mulf %158, %163 : vector<8x128xf32>
    %165 = arith.addf %161, %164 : vector<8x128xf32>
    %c0_45 = arith.constant 0 : index
    %c0_46 = arith.constant 0 : index
    %c0_47 = arith.constant 0 : index
    %166 = vector.load %arg6[%c0_45, %c0_46, %c0_47] : memref<1x8x128xf32, #tpu.memory_space<vmem>>, vector<1x8x128xf32>
    %167 = vector.shape_cast %166 : vector<1x8x128xf32> to vector<8x128xf32>
    %168 = vector.shape_cast %165 : vector<8x128xf32> to vector<1x8x128xf32>
    tpu.vector_store %arg6[%c0_45, %c0_46, %c0_47], %168 {strides = array<i32>} : memref<1x8x128xf32, #tpu.memory_space<vmem>>, vector<1x8x128xf32>,
    return
  }
  func.func @transform_0(%arg0: i32, %arg1: i32, %arg2: memref<2x8xf32, #tpu.memory_space<smem>>, %arg3: memref<2x8xf32, #tpu.memory_space<smem>>) -> (i32, i32, i32) {
    %c0_i32 = arith.constant 0 : i32
    %c0_i32_0 = arith.constant 0 : i32
    return %arg0, %arg1, %c0_i32 : i32, i32, i32
  }
  func.func @transform_1(%arg0: i32, %arg1: i32, %arg2: memref<2x8xf32, #tpu.memory_space<smem>>, %arg3: memref<2x8xf32, #tpu.memory_space<smem>>) -> (i32, i32, i32) {
    %c0_i32 = arith.constant 0 : i32
    %c0_i32_0 = arith.constant 0 : i32
    return %arg0, %arg1, %c0_i32 : i32, i32, i32
  }
  func.func @transform_2(%arg0: i32, %arg1: i32, %arg2: memref<2x8xf32, #tpu.memory_space<smem>>, %arg3: memref<2x8xf32, #tpu.memory_space<smem>>) -> (i32, i32, i32) {
    %c0_i32 = arith.constant 0 : i32
    %c0_i32_0 = arith.constant 0 : i32
    return %arg0, %arg1, %c0_i32 : i32, i32, i32
  }
}

</mosaic_0001>

<llo_original>
// kernel: tpu_custom_call.1
$region0: #{tpu_custom_call.1}
  #allocation0 [shape = 'u32[]', space=smem, size = 0x4, offset = 0x4, fixed_abs, tag = 'smem constant byte address 0x4 - core index']
  #allocation1 [shape = 'u32[144,128]{1,0:T(1,128)}', space=vmem, size = 0x12000, scoped, tag = 'internal scratch']
  #allocation2 [shape = 's32[1]{0}', space=sflag, size = 0x4, scoped, tag = 'scoped memory for tpu_custom_call.1']
  #allocation3 [shape = 'u8[1024]{0}', space=smem, size = 0x400, scoped, tag = 'prefetched SMEM operand 0']
  #allocation4 [shape = 'u8[1024]{0}', space=smem, size = 0x400, scoped, tag = 'prefetched SMEM operand 1']
  %s0 = inlined_call_operand.hbm [shape: f32[2,8], index: 0, kind: input, shape index: {}]
  %s1 = inlined_call_operand.vmem [shape: f32[2,8], index: 1, kind: input, shape index: {}]
  %s2 = inlined_call_operand.hbm [shape: f32[2,8,128], index: 2, kind: input, shape index: {}]
  %s3 = inlined_call_operand.hbm [shape: f32[2,8,128], index: 3, kind: input, shape index: {}]
  %s4 = inlined_call_operand.hbm [shape: f32[2,8,128], index: 4, kind: output, shape index: {}]
  %s5 = sld [smem:[#allocation0]]
  $region49: #{tpu_custom_call.1} parent=0
    _
  %s7 = ssub.s32 1, %s5
  %s8 = scalar_select 0, %s7, %s5
  %10 = dma.hbm_to_smem %s0, 32, [#allocation3], [#allocation2]
  %s11 = sshll.u32 %s1, 4
  %s12 = int_to_ptr.vmem [resolvable:$true] %s11
  %14 = dma.vmem_to_smem %s12, 32, [#allocation4], [#allocation2]
  %15 = dma.done [#allocation2], 64
  %16 = sfence
  $region1: #{tpu_custom_call.1} parent=0
    #allocation5 [shape = 'u8[8192]{0}', space=vmem, size = 0x2000, scoped, tag = 'input window, operand 2']
    #allocation6 [shape = 's32[2]{0}', space=sflag, size = 0x8, scoped, tag = 'scoped memory for tpu_custom_call.1']
    #allocation7 [shape = 's32[2]{0}', space=sflag, size = 0x8, scoped, tag = 'scoped memory for tpu_custom_call.1']
    #allocation8 [shape = 'u8[8192]{0}', space=vmem, size = 0x2000, scoped, tag = 'input window, operand 3']
    #allocation9 [shape = 's32[2]{0}', space=sflag, size = 0x8, scoped, tag = 'scoped memory for tpu_custom_call.1']
    #allocation10 [shape = 'u8[8192]{0}', space=vmem, size = 0x2000, scoped, tag = 'output window, operand 0']
    %17 = vsyncpa [#allocation6], 0
    %s18 = scalar_lea.sflag [#allocation6], 1
    %19 = vsyncpa %s18, 0
    %20 = vsyncpa [#allocation9], 0
    %s21 = scalar_lea.sflag [#allocation9], 1
    %22 = vsyncpa %s21, 0
    %23 = vsyncpa [#allocation7], 0
    %s24 = scalar_lea.sflag [#allocation7], 1
    %25 = vsyncpa %s24, 0
    loop: start=0, step=1, limit=4
    $region2: #{tpu_custom_call.1} parent=1 // loop_pre_header
      _
    $region3: #{tpu_custom_call.1} parent=1 // loop_header
      %s27 = sphi 0, %s31
      %p28 = scmp.ge.s32.totalorder %s27, 4
      %s34 = sphi 0, %s46
      %s35 = sphi 0, %s42
      %s36 = sphi 0, %s34
      %s37 = sphi 0, %s35
      %s38 = sphi 0, %s36
      %s39 = sphi 0, %s37
      %s51 = sphi 0, %s53
      %s54 = sphi 0, %s51
      %s55 = sphi 0, %s54
      %s71 = sphi 0, %s55
      %s79 = sphi 0, %s81
      %s82 = sphi 0, %s79
      %s83 = sphi 0, %s82
      %s99 = sphi 0, %s83
      %s107 = sphi 0, %s109
      %s110 = sphi 0, %s107
      %s111 = sphi 0, %s110
      %s127 = sphi 0, %s111
    $region4: #{tpu_custom_call.1} parent=1 // loop_header_branch
      %30 = sbr.rel (%p28) target = $region8
    $region5: #{tpu_custom_call.1} parent=1 // loop_body
      %s32 = ssub.s32 %s27, 1
      %s33 = ssub.s32 %s27, 2
      %s40 = sadd.s32 1, %s35
      %p41 = scmp.ge.s32.totalorder %s40, 1
      %s42 = scalar_select %p41, 0, %s40
      %s43 = sadd.s32 1, %s34
      %s44 = scalar_select %p41, %s43, %s34
      %p45 = scmp.ge.s32.totalorder %s44, 2
      %s46 = scalar_select %p45, 0, %s44
      %s47 = ssub.s32 %s34, %s46
      %s48 = ssub.s32 %s35, %s42
      %s49 = sor.u32 %s47, %s48
      %p50 = scmp.eq.s32.totalorder %s49, 0
      %s52 = sadd.s32 %s51, 1
      %s53 = scalar_select %p50, %s51, %s52
      %p56 = pneg %p50
      %p57 = scmp.eq.s32.totalorder %s27, 1
      %p58 = por %p56, %p57
      %p59 = scmp.ne.s32.totalorder %s51, %s54
      %p60 = scmp.eq.s32.totalorder %s27, 0
      %p61 = por %p59, %p60
      %p62 = scmp.ne.s32.totalorder %s51, %s54
      %p63 = scmp.eq.s32.totalorder %s32, 1
      %p64 = por %p62, %p63
      %p65 = scmp.ne.s32.totalorder %s54, %s55
      %p66 = scmp.eq.s32.totalorder %s32, 0
      %p67 = por %p65, %p66
      %p68 = scmp.ne.s32.totalorder %s54, %s55
      %p69 = scmp.eq.s32.totalorder %s33, 1
      %p70 = por %p68, %p69
      %p72 = scmp.ne.s32.totalorder %s55, %s71
      %p73 = scmp.eq.s32.totalorder %s33, 0
      %p74 = por %p72, %p73
      %s75 = ssub.s32 %s34, %s46
      %s76 = ssub.s32 %s35, %s42
      %s77 = sor.u32 %s75, %s76
      %p78 = scmp.eq.s32.totalorder %s77, 0
      %s80 = sadd.s32 %s79, 1
      %s81 = scalar_select %p78, %s79, %s80
      %p84 = pneg %p78
      %p85 = scmp.eq.s32.totalorder %s27, 1
      %p86 = por %p84, %p85
      %p87 = scmp.ne.s32.totalorder %s79, %s82
      %p88 = scmp.eq.s32.totalorder %s27, 0
      %p89 = por %p87, %p88
      %p90 = scmp.ne.s32.totalorder %s79, %s82
      %p91 = scmp.eq.s32.totalorder %s32, 1
      %p92 = por %p90, %p91
      %p93 = scmp.ne.s32.totalorder %s82, %s83
      %p94 = scmp.eq.s32.totalorder %s32, 0
      %p95 = por %p93, %p94
      %p96 = scmp.ne.s32.totalorder %s82, %s83
      %p97 = scmp.eq.s32.totalorder %s33, 1
      %p98 = por %p96, %p97
      %p100 = scmp.ne.s32.totalorder %s83, %s99
      %p101 = scmp.eq.s32.totalorder %s33, 0
      %p102 = por %p100, %p101
      %s103 = ssub.s32 %s34, %s46
      %s104 = ssub.s32 %s35, %s42
      %s105 = sor.u32 %s103, %s104
      %p106 = scmp.eq.s32.totalorder %s105, 0
      %s108 = sadd.s32 %s107, 1
      %s109 = scalar_select %p106, %s107, %s108
      %p112 = pneg %p106
      %p113 = scmp.eq.s32.totalorder %s27, 1
      %p114 = por %p112, %p113
      %p115 = scmp.ne.s32.totalorder %s107, %s110
      %p116 = scmp.eq.s32.totalorder %s27, 0
      %p117 = por %p115, %p116
      %p118 = scmp.ne.s32.totalorder %s107, %s110
      %p119 = scmp.eq.s32.totalorder %s32, 1
      %p120 = por %p118, %p119
      %p121 = scmp.ne.s32.totalorder %s110, %s111
      %p122 = scmp.eq.s32.totalorder %s32, 0
      %p123 = por %p121, %p122
      %p124 = scmp.ne.s32.totalorder %s110, %s111
      %p125 = scmp.eq.s32.totalorder %s33, 1
      %p126 = por %p124, %p125
      %p128 = scmp.ne.s32.totalorder %s111, %s127
      %p129 = scmp.eq.s32.totalorder %s33, 0
      %p130 = por %p128, %p129
      %p131 = scmp.le.s32.totalorder 1, %s27
      %p132 = scmp.lt.s32.totalorder %s27, 3
      %p133 = pnand %p131, %p132
      %p134 = pneg %p133
      // Predicated region
      $region9: #{tpu_custom_call.1} parent=5 // pred_check
        _
      $region10: #{tpu_custom_call.1} parent=5 // pred_check_branch
        %136 = sbr.rel (%p133) target = $region12
      $region11: #{tpu_custom_call.1} parent=5 // pred_region
        %s137 = ssub.s32 %s27, 1
      $region12: #{tpu_custom_call.1} parent=5 // pred_fallthru
        _
      %p138 = scmp.lt.s32.totalorder %s27, 2
      // Predicated region
      $region13: #{tpu_custom_call.1} parent=5 // pred_check
        %p139 = pneg %p138
      $region14: #{tpu_custom_call.1} parent=5 // pred_check_branch
        %141 = sbr.rel (%p139) target = $region16
      $region15: #{tpu_custom_call.1} parent=5 // pred_region
        // Predicated region
        $region17: #{tpu_custom_call.1} parent=15 // pred_check
          %p142 = pneg %p61
        $region18: #{tpu_custom_call.1} parent=15 // pred_check_branch
          %144 = sbr.rel (%p142) target = $region20
        $region19: #{tpu_custom_call.1} parent=15 // pred_region
          %s145 = sand.u32 %s51, 1
          %s146 = scalar_lea.sflag [#allocation6], %s145
          %s147 = sand.u32 %s51, 1
          %s148 = smul.addr %s147, 8
          %s149 = scalar_lea.vmem [#allocation5], %s148
          %s151 = ssub.s32 128, 128
          %152 = vsyncadd %s146, %s151
          %s153 = sadd.s32 %s35, %s34
          %s154 = smul.addr %s153, 128
          %s155 = scalar_lea.hbm %s2, %s154
          %s157 = sshll.u32 %s149, 4
          %s158 = int_to_ptr.vmem [resolvable:$true] %s157
          %160 = dma.hbm_to_vmem [thread:$0]  %s155, 128, %s158, %s146
        $region20: #{tpu_custom_call.1} parent=15 // pred_fallthru
          _
        // Predicated region
        $region21: #{tpu_custom_call.1} parent=15 // pred_check
          %p161 = pneg %p89
        $region22: #{tpu_custom_call.1} parent=15 // pred_check_branch
          %163 = sbr.rel (%p161) target = $region24
        $region23: #{tpu_custom_call.1} parent=15 // pred_region
          %s164 = sand.u32 %s79, 1
          %s165 = scalar_lea.sflag [#allocation9], %s164
          %s166 = sand.u32 %s79, 1
          %s167 = smul.addr %s166, 8
          %s168 = scalar_lea.vmem [#allocation8], %s167
          %s170 = ssub.s32 128, 128
          %171 = vsyncadd %s165, %s170
          %s172 = sadd.s32 %s35, %s34
          %s173 = smul.addr %s172, 128
          %s174 = scalar_lea.hbm %s3, %s173
          %s176 = sshll.u32 %s168, 4
          %s177 = int_to_ptr.vmem [resolvable:$true] %s176
          %179 = dma.hbm_to_vmem [thread:$0]  %s174, 128, %s177, %s165
        $region24: #{tpu_custom_call.1} parent=15 // pred_fallthru
          _
      $region16: #{tpu_custom_call.1} parent=5 // pred_fallthru
        _
      %p180 = scmp.le.s32.totalorder 1, %s27
      %p181 = scmp.lt.s32.totalorder %s27, 3
      %p182 = pnand %p180, %p181
      %p183 = pneg %p182
      // Predicated region
      $region25: #{tpu_custom_call.1} parent=5 // pred_check
        _
      $region26: #{tpu_custom_call.1} parent=5 // pred_check_branch
        %185 = sbr.rel (%p182) target = $region28
      $region27: #{tpu_custom_call.1} parent=5 // pred_region
        %s186 = ssub.s32 %s27, 1
        %s187 = sand.u32 %s54, 1
        %s188 = scalar_lea.sflag [#allocation6], %s187
        %s189 = sand.u32 %s54, 1
        %s190 = smul.addr %s189, 8
        %s191 = scalar_lea.vmem [#allocation5], %s190
        // Predicated region
        $region29: #{tpu_custom_call.1} parent=27 // pred_check
          %p192 = pneg %p67
        $region30: #{tpu_custom_call.1} parent=27 // pred_check_branch
          %194 = sbr.rel (%p192) target = $region32
        $region31: #{tpu_custom_call.1} parent=27 // pred_region
          %195 = dma.done %s188, 128
        $region32: #{tpu_custom_call.1} parent=27 // pred_fallthru
          _
        %s196 = sand.u32 %s82, 1
        %s197 = scalar_lea.sflag [#allocation9], %s196
        %s198 = sand.u32 %s82, 1
        %s199 = smul.addr %s198, 8
        %s200 = scalar_lea.vmem [#allocation8], %s199
        // Predicated region
        $region33: #{tpu_custom_call.1} parent=27 // pred_check
          %p201 = pneg %p95
        $region34: #{tpu_custom_call.1} parent=27 // pred_check_branch
          %203 = sbr.rel (%p201) target = $region36
        $region35: #{tpu_custom_call.1} parent=27 // pred_region
          %204 = dma.done %s197, 128
        $region36: #{tpu_custom_call.1} parent=27 // pred_fallthru
          _
        %s205 = sand.u32 %s54, 1
        %s206 = scalar_lea.sflag [#allocation6], %s205
        %s207 = sand.u32 %s54, 1
        %s208 = smul.addr %s207, 8
        %s209 = scalar_lea.vmem [#allocation5], %s208
        %p210 = pneg %p67
        %p211 = pneg %p64
        %s212 = sand.u32 %s82, 1
        %s213 = scalar_lea.sflag [#allocation9], %s212
        %s214 = sand.u32 %s82, 1
        %s215 = smul.addr %s214, 8
        %s216 = scalar_lea.vmem [#allocation8], %s215
        %p217 = pneg %p95
        %p218 = pneg %p92
        %p219 = pneg %p123
        %p220 = pneg %p120
        %s221 = sand.u32 %s110, 1
        %s222 = scalar_lea.sflag [#allocation7], %s221
        %s223 = sand.u32 %s110, 1
        %s224 = smul.addr %s223, 8
        %s225 = scalar_lea.vmem [#allocation10], %s224
        %v226 = vlaneseq
        %v227 = vshrl.u32 %v226, 7
        %v228 = vlaneseq
        %v229 = vand.u32 %v228, 127
        %v230 = vmul.u32 %v227, 128
        %v231 = vadd.s32 %v230, %v229
        %v232 = vcvt.s32.f32 %v231
        %s233 = smul.u32 %s37, 1024
        %s234 = scvt.s32.f32 %s233
        %s235 = smul.f32 %s234, 0.0078125
        %v236 = vadd.f32 %v232, 0.5
        %v237 = vmul.f32 %v236, 0.0078125
        %v238 = vstv %s235
        %v239 = vadd.f32 %v238, %v237
        %v240 = vsub.f32 %v239, 0.5
        %v241 = vmax.f32 %v240, 0.0
        %v242 = vmin.f32 %v241, 7.0
        %v243 = vand.u32 2147483647, %v242
        %v244 = vsub.f32 1.0, %v243
        %v245 = vmax.f32 %v244, 0.0
        %s246 = smul.u32 %s36, 128
        %s247 = sld [smem:[#allocation3 + %s246]]
        %v248 = vstv %s247
        %v249 = vmul.f32 %v245, %v248
        %v250 = vadd.f32 %v249, 0.0
        %s251 = sld [smem:[#allocation4 + %s246]]
        %v252 = vstv %s251
        %v253 = vmul.f32 %v245, %v252
        %v254 = vadd.f32 %v253, 0.0
        %v255 = vsub.f32 %v242, 1.0
        %v256 = vand.u32 2147483647, %v255
        %v257 = vsub.f32 1.0, %v256
        %v258 = vmax.f32 %v257, 0.0
        %s259 = sadd.s32 %s246, 1
        %s260 = sld [smem:[#allocation3 + %s259]]
        %v261 = vstv %s260
        %v262 = vmul.f32 %v258, %v261
        %v263 = vadd.f32 %v250, %v262
        %s264 = sld [smem:[#allocation4 + %s259]]
        %v265 = vstv %s264
        %v266 = vmul.f32 %v258, %v265
        %v267 = vadd.f32 %v254, %v266
        %v268 = vsub.f32 %v242, 2.0
        %v269 = vand.u32 2147483647, %v268
        %v270 = vsub.f32 1.0, %v269
        %v271 = vmax.f32 %v270, 0.0
        %s272 = sadd.s32 %s246, 2
        %s273 = sld [smem:[#allocation3 + %s272]]
        %v274 = vstv %s273
        %v275 = vmul.f32 %v271, %v274
        %v276 = vadd.f32 %v263, %v275
        %s277 = sld [smem:[#allocation4 + %s272]]
        %v278 = vstv %s277
        %v279 = vmul.f32 %v271, %v278
        %v280 = vadd.f32 %v267, %v279
        %v281 = vsub.f32 %v242, 3.0
        %v282 = vand.u32 2147483647, %v281
        %v283 = vsub.f32 1.0, %v282
        %v284 = vmax.f32 %v283, 0.0
        %s285 = sadd.s32 %s246, 3
        %s286 = sld [smem:[#allocation3 + %s285]]
        %v287 = vstv %s286
        %v288 = vmul.f32 %v284, %v287
        %v289 = vadd.f32 %v276, %v288
        %s290 = sld [smem:[#allocation4 + %s285]]
        %v291 = vstv %s290
        %v292 = vmul.f32 %v284, %v291
        %v293 = vadd.f32 %v280, %v292
        %v294 = vsub.f32 %v242, 4.0
        %v295 = vand.u32 2147483647, %v294
        %v296 = vsub.f32 1.0, %v295
        %v297 = vmax.f32 %v296, 0.0
        %s298 = sadd.s32 %s246, 4
        %s299 = sld [smem:[#allocation3 + %s298]]
        %v300 = vstv %s299
        %v301 = vmul.f32 %v297, %v300
        %v302 = vadd.f32 %v289, %v301
        %s303 = sld [smem:[#allocation4 + %s298]]
        %v304 = vstv %s303
        %v305 = vmul.f32 %v297, %v304
        %v306 = vadd.f32 %v293, %v305
        %v307 = vsub.f32 %v242, 5.0
        %v308 = vand.u32 2147483647, %v307
        %v309 = vsub.f32 1.0, %v308
        %v310 = vmax.f32 %v309, 0.0
        %s311 = sadd.s32 %s246, 5
        %s312 = sld [smem:[#allocation3 + %s311]]
        %v313 = vstv %s312
        %v314 = vmul.f32 %v310, %v313
        %v315 = vadd.f32 %v302, %v314
        %s316 = sld [smem:[#allocation4 + %s311]]
        %v317 = vstv %s316
        %v318 = vmul.f32 %v310, %v317
        %v319 = vadd.f32 %v306, %v318
        %v320 = vsub.f32 %v242, 6.0
        %v321 = vand.u32 2147483647, %v320
        %v322 = vsub.f32 1.0, %v321
        %v323 = vmax.f32 %v322, 0.0
        %s324 = sadd.s32 %s246, 6
        %s325 = sld [smem:[#allocation3 + %s324]]
        %v326 = vstv %s325
        %v327 = vmul.f32 %v323, %v326
        %v328 = vadd.f32 %v315, %v327
        %s329 = sld [smem:[#allocation4 + %s324]]
        %v330 = vstv %s329
        %v331 = vmul.f32 %v323, %v330
        %v332 = vadd.f32 %v319, %v331
        %v333 = vsub.f32 %v242, 7.0
        %v334 = vand.u32 2147483647, %v333
        %v335 = vsub.f32 1.0, %v334
        %v336 = vmax.f32 %v335, 0.0
        %s337 = sadd.s32 %s246, 7
        %s338 = sld [smem:[#allocation3 + %s337]]
        %v339 = vstv %s338
        %v340 = vmul.f32 %v336, %v339
        %v341 = vadd.f32 %v328, %v340
        %s342 = sld [smem:[#allocation4 + %s337]]
        %v343 = vstv %s342
        %v344 = vmul.f32 %v336, %v343
        %v345 = vadd.f32 %v332, %v344
        %v346 = vld [vmem:[%s191] sm:$0xff]
        %v347 = vmul.f32 %v341, %v346
        %v348 = vld [vmem:[%s200] sm:$0xff]
        %v349 = vmul.f32 %v345, %v348
        %v350 = vadd.f32 %v347, %v349
        %351 = vst [vmem:[%s225] sm:$0xff] %v350
        %s352 = sand.u32 %s110, 1
        %s353 = scalar_lea.sflag [#allocation7], %s352
        %s354 = sand.u32 %s110, 1
        %s355 = smul.addr %s354, 8
        %s356 = scalar_lea.vmem [#allocation10], %s355
        // Predicated region
        $region37: #{tpu_custom_call.1} parent=27 // pred_check
          %p357 = pneg %p120
        $region38: #{tpu_custom_call.1} parent=27 // pred_check_branch
          %359 = sbr.rel (%p357) target = $region40
        $region39: #{tpu_custom_call.1} parent=27 // pred_region
          %s361 = ssub.s32 128, 128
          %362 = vsyncadd %s353, %s361
          %s363 = sadd.s32 %s37, %s36
          %s364 = smul.addr %s363, 128
          %s365 = scalar_lea.hbm %s4, %s364
          %s367 = sshll.u32 %s356, 4
          %s368 = int_to_ptr.vmem [resolvable:$true] %s367
          %370 = dma.vmem_to_hbm [thread:$0]  %s368, 128, %s365, %s353
        $region40: #{tpu_custom_call.1} parent=27 // pred_fallthru
          _
      $region28: #{tpu_custom_call.1} parent=5 // pred_fallthru
        _
      %p371 = scmp.le.s32.totalorder 2, %s27
      // Predicated region
      $region41: #{tpu_custom_call.1} parent=5 // pred_check
        %p372 = pneg %p371
      $region42: #{tpu_custom_call.1} parent=5 // pred_check_branch
        %374 = sbr.rel (%p372) target = $region44
      $region43: #{tpu_custom_call.1} parent=5 // pred_region
        %s375 = ssub.s32 %s27, 2
        // Predicated region
        $region45: #{tpu_custom_call.1} parent=43 // pred_check
          %p376 = pneg %p126
        $region46: #{tpu_custom_call.1} parent=43 // pred_check_branch
          %378 = sbr.rel (%p376) target = $region48
        $region47: #{tpu_custom_call.1} parent=43 // pred_region
          %s379 = sand.u32 %s111, 1
          %s380 = scalar_lea.sflag [#allocation7], %s379
          %s381 = sand.u32 %s111, 1
          %s382 = smul.addr %s381, 8
          %s383 = scalar_lea.vmem [#allocation10], %s382
          %384 = dma.done %s380, 128
        $region48: #{tpu_custom_call.1} parent=43 // pred_fallthru
          _
      $region44: #{tpu_custom_call.1} parent=5 // pred_fallthru
        _
    $region6: #{tpu_custom_call.1} parent=1 // loop_footer
      %s31 = sadd.s32 1, %s27
    $region7: #{tpu_custom_call.1} parent=1 // loop_footer_branch
      %26 = sbr.rel target = $region3
    $region8: #{tpu_custom_call.1} parent=1 // loop_exit
      _
    %385 = vsyncpa [#allocation6], 1
    %s386 = scalar_lea.sflag [#allocation6], 1
    %387 = vsyncpa %s386, 1
    %388 = vsyncpa [#allocation9], 1
    %s389 = scalar_lea.sflag [#allocation9], 1
    %390 = vsyncpa %s389, 1
    %391 = vsyncpa [#allocation7], 1
    %s392 = scalar_lea.sflag [#allocation7], 1
    %393 = vsyncpa %s392, 1

</llo_original>
